<compile_context>
chip_gen: v6e
topology: v6e:2x2x1
jax: 0.10.0
libtpu: 0.0.40
codegen_flags: <defaults>
</compile_context>

<pallas_src>
import jax
import jax.numpy as jnp
from jax.experimental import pallas as pl
from jax.experimental.pallas import tpu as pltpu


def _disc_kernel(x_ref, w_ref, b_ref, o_ref):
    # x_ref: (TB, F) native dtype (VMEM)   w_ref: (1, F) f32 (VMEM, lane-dense row)
    # b_ref: (1,) f32 (SMEM scalar)        o_ref: (1, TB) f32 (lane-dense output)
    x = x_ref[...].astype(jnp.float32)          # cast after DMA (bf16-friendly HBM traffic)
    p = x * w_ref[...]                          # (TB, F) VPU multiply, weight row broadcast
    y = jnp.sum(p, axis=-1) + b_ref[0]          # XLU lane reduce -> (TB,), lane-major layout
    y = jnp.maximum(y, 0.2 * y)                 # LeakyReLU(0.2): mul + max (2 VALU ops)
    y = 1.0 / (1.0 + jnp.exp(-y))               # exact sigmoid (exp on EUP)
    o_ref[0, :] = y                             # unmasked, full-lane store into (1, TB) block


def discriminator_forward(z_nero, weight, bias, *, batch_tile=16384):
    """z_nero: (B, 2H), weight: (1, 2H), bias: (1,) -> (B, 1) f32."""
    B, F = z_nero.shape

    # Batch-tile selection:
    #  * large B: 16384-row tiles (4 MiB f32 blocks) to amortize per-step overhead.
    #  * moderate, 256-aligned B: split in two so v7x megacore gets >= 2 parallel steps.
    #  * otherwise: whole batch in one step (block shape equals full array dims).
    if B > batch_tile:
        TB = batch_tile                 # multiple of 8 and 128 -> valid block shapes
    elif B >= 512 and B % 256 == 0:
        TB = B // 2                     # >=2 grid steps; TB % 128 == 0 by construction
    else:
        TB = B
    grid = (pl.cdiv(B, TB),)

    w_row = weight.reshape(1, F).astype(jnp.float32)   # lane-dense weight row (resident)
    b1 = bias.reshape(1).astype(jnp.float32)           # scalar -> SMEM

    cost = pl.CostEstimate(
        flops=2 * B * F + 4 * B,
        transcendentals=B,
        bytes_accessed=B * F * z_nero.dtype.itemsize + B * 4 + F * 4,
    )

    out_row = pl.pallas_call(
        _disc_kernel,
        out_shape=jax.ShapeDtypeStruct((1, B), jnp.float32),
        grid=grid,
        in_specs=[
            pl.BlockSpec((TB, F), lambda i: (i, 0)),              # batch-tiled input
            pl.BlockSpec((1, F), lambda i: (0, 0)),               # weight row (resident)
            pl.BlockSpec(memory_space=pltpu.MemorySpace.SMEM),    # bias scalar in SMEM
        ],
        out_specs=pl.BlockSpec((1, TB), lambda i: (0, i)),        # lane-dense output
        compiler_params=pltpu.CompilerParams(
            dimension_semantics=("parallel",),                    # megacore sharding on v7x
        ),
        cost_estimate=cost,
    )(z_nero, w_row, b1)

    return out_row.reshape(B, 1)                                  # module semantics: (B, 1)


def _reference(z_nero, weight, bias):
    y = z_nero.astype(jnp.float32) @ weight.astype(jnp.float32).T + bias.astype(jnp.float32)
    y = jnp.maximum(y, 0.2 * y)
    return 1.0 / (1.0 + jnp.exp(-y))


if __name__ == "__main__":
    hidden_size = 32
    batch = 8
    feat = hidden_size * 2  # 64

    key = jax.random.PRNGKey(0)
    k_x, k_w, k_b = jax.random.split(key, 3)

    # Deterministic param init mimicking nn.Linear default (uniform +/- 1/sqrt(fan_in))
    bound = 1.0 / jnp.sqrt(jnp.float32(feat))
    weight = jax.random.uniform(k_w, (1, feat), jnp.float32, -bound, bound)
    bias = jax.random.uniform(k_b, (1,), jnp.float32, -bound, bound)

    # Production-like small shape (B=8, F=64).
    z_nero = jax.random.normal(k_x, (batch, feat), jnp.float32)
    out = jax.block_until_ready(discriminator_forward(z_nero, weight, bias))
    ref = _reference(z_nero, weight, bias)
    assert out.shape == (batch, 1)
    assert jnp.allclose(out, ref, atol=1e-4, rtol=1e-4), "mismatch vs reference (small batch)"

    # Larger batch to exercise the multi-step (tiled, megacore-parallel) path.
    big_batch = 512
    z_big = jax.random.normal(jax.random.PRNGKey(1), (big_batch, feat), jnp.float32)
    out_big = jax.block_until_ready(discriminator_forward(z_big, weight, bias))
    ref_big = _reference(z_big, weight, bias)
    assert out_big.shape == (big_batch, 1)
    assert jnp.allclose(out_big, ref_big, atol=1e-4, rtol=1e-4), "mismatch vs reference (tiled)"

    print("KERNEL_OK")
</pallas_src>

<mosaic_0001>
module attributes {stable_mosaic.version = 11 : i64} {
  func.func @_disc_kernel(%arg0: i32, %arg1: memref<8x64xf32, #tpu.memory_space<vmem>>, %arg2: memref<1x64xf32, #tpu.memory_space<vmem>>, %arg3: memref<1xf32, #tpu.memory_space<smem>>, %arg4: memref<1x8xf32, #tpu.memory_space<vmem>>) attributes {dimension_semantics = [#tpu.dimension_semantics<parallel>], iteration_bounds = array<i64: 1>, scalar_prefetch = 0 : i64, scratch_operands = 0 : i64, tpu.core_type = #tpu.core_type<tc>, window_params = [{transform_indices = @transform_0, window_bounds = array<i64: 8, 64>}, {pipeline_mode = #tpu.pipeline_mode<synchronous>, transform_indices = @transform_1, window_bounds = array<i64: 1, 64>}, {transform_indices = @transform_2, window_bounds = array<i64: 1>}, {transform_indices = @transform_3, window_bounds = array<i64: 1, 8>}]} {
    %c0 = arith.constant 0 : index
    %c0_0 = arith.constant 0 : index
    %0 = vector.load %arg1[%c0, %c0_0] : memref<8x64xf32, #tpu.memory_space<vmem>>, vector<8x64xf32>
    %c0_1 = arith.constant 0 : index
    %c0_2 = arith.constant 0 : index
    %1 = vector.load %arg2[%c0_1, %c0_2] : memref<1x64xf32, #tpu.memory_space<vmem>>, vector<1x64xf32>
    %2 = vector.broadcast %1 : vector<1x64xf32> to vector<8x64xf32>
    %3 = arith.mulf %0, %2 : vector<8x64xf32>
    %cst = arith.constant dense<0.000000e+00> : vector<8xf32>
    %4 = vector.multi_reduction <add>, %3, %cst [1] : vector<8x64xf32> to vector<8xf32>
    %c0_3 = arith.constant 0 : index
    %5 = memref.load %arg3[%c0_3] : memref<1xf32, #tpu.memory_space<smem>>
    %6 = vector.broadcast %5 : f32 to vector<8xf32>
    %7 = arith.addf %4, %6 : vector<8xf32>
    %cst_4 = arith.constant 2.000000e-01 : f32
    %8 = vector.broadcast %cst_4 : f32 to vector<8xf32>
    %9 = arith.mulf %8, %7 : vector<8xf32>
    %10 = arith.maximumf %7, %9 : vector<8xf32>
    %cst_5 = arith.constant 0.000000e+00 : f32
    %11 = vector.broadcast %cst_5 : f32 to vector<8xf32>
    %12 = arith.subf %11, %10 : vector<8xf32>
    %13 = math.exp %12 : vector<8xf32>
    %cst_6 = arith.constant 1.000000e+00 : f32
    %14 = vector.broadcast %cst_6 : f32 to vector<8xf32>
    %15 = arith.addf %14, %13 : vector<8xf32>
    %cst_7 = arith.constant 1.000000e+00 : f32
    %16 = vector.broadcast %cst_7 : f32 to vector<8xf32>
    %17 = arith.divf %16, %15 : vector<8xf32>
    %c0_8 = arith.constant 0 : index
    %c0_9 = arith.constant 0 : index
    %18 = vector.load %arg4[%c0_8, %c0_9] : memref<1x8xf32, #tpu.memory_space<vmem>>, vector<1x8xf32>
    %19 = vector.shape_cast %18 : vector<1x8xf32> to vector<8xf32>
    %20 = vector.shape_cast %17 : vector<8xf32> to vector<1x8xf32>
    tpu.vector_store %arg4[%c0_8, %c0_9], %20 {strides = array<i32>} : memref<1x8xf32, #tpu.memory_space<vmem>>, vector<1x8xf32>,
    return
  }
  func.func @transform_0(%arg0: i32) -> (i32, i32) {
    %c0_i32 = arith.constant 0 : i32
    %c0_i32_0 = arith.constant 0 : i32
    return %arg0, %c0_i32 : i32, i32
  }
  func.func @transform_1(%arg0: i32) -> (i32, i32) {
    %c0_i32 = arith.constant 0 : i32
    %c0_i32_0 = arith.constant 0 : i32
    %c0_i32_1 = arith.constant 0 : i32
    return %c0_i32, %c0_i32_0 : i32, i32
  }
  func.func @transform_2(%arg0: i32) -> i32 {
    %c0_i32 = arith.constant 0 : i32
    %c0_i32_0 = arith.constant 0 : i32
    return %c0_i32 : i32
  }
  func.func @transform_3(%arg0: i32) -> (i32, i32) {
    %c0_i32 = arith.constant 0 : i32
    %c0_i32_0 = arith.constant 0 : i32
    return %c0_i32, %arg0 : i32, i32
  }
}

</mosaic_0001>

<llo_original>
// kernel: tpu_custom_call.1
$region0: #{tpu_custom_call.1}
  #allocation0 [shape = 'u32[]', space=smem, size = 0x4, offset = 0x4, fixed_abs, tag = 'smem constant byte address 0x4 - core index']
  #allocation1 [shape = 'u32[144,128]{1,0:T(1,128)}', space=vmem, size = 0x12000, scoped, tag = 'internal scratch']
  #allocation2 [shape = 'f32[1]{0:T(128)S(6)}', space=smem, size = 0x200, scoped, tag = 'scoped memory for tpu_custom_call.1']
  %s0 = inlined_call_operand.hbm [shape: f32[8,64], index: 0, kind: input, shape index: {}]
  %s1 = inlined_call_operand.vmem [shape: f32[1,64], index: 1, kind: input, shape index: {}]
  %s2 = inlined_call_operand.<no memory space> [shape: f32[1], index: 2, kind: input, shape index: {}]
  %s3 = inlined_call_operand.hbm [shape: f32[1,8], index: 3, kind: output, shape index: {}]
  %s4 = sld [smem:[#allocation0]]
  $region26: #{tpu_custom_call.1} parent=0
    _
  %s6 = ssub.s32 1, %s4
  %s7 = scalar_select 0, %s6, %s4
  %8 = sst [smem:[#allocation2]] %s2
  $region1: #{tpu_custom_call.1} parent=0
    #allocation3 [shape = 'u8[4096]{0}', space=vmem, size = 0x1000, scoped, tag = 'input window, operand 0, single buffered']
    #allocation4 [shape = 's32[1]{0}', space=sflag, size = 0x4, scoped, tag = 'scoped memory for tpu_custom_call.1']
    #allocation5 [shape = 's32[1]{0}', space=sflag, size = 0x4, scoped, tag = 'scoped memory for tpu_custom_call.1']
    #allocation6 [shape = 'u8[512]{0}', space=vmem, size = 0x400, scoped, tag = 'output window, operand 0, single buffered']
    %9 = vsyncpa [#allocation4], 0
    %10 = vsyncpa [#allocation5], 0
    // Predicated region
    $region2: #{tpu_custom_call.1} parent=1 // pred_check
      _
    $region3: #{tpu_custom_call.1} parent=1 // pred_check_branch
      %12 = sbr.rel (0) target = $region5
    $region4: #{tpu_custom_call.1} parent=1 // pred_region
      %s14 = ssub.s32 128, 128
      %15 = vsyncadd [#allocation4], %s14
      %s17 = sshll.u32 [#allocation3], 4
      %s18 = int_to_ptr.vmem [resolvable:$true] %s17
      %20 = dma.hbm_to_vmem [thread:$0]  %s0, 128, %s18, [#allocation4]
    $region5: #{tpu_custom_call.1} parent=1 // pred_fallthru
      _
    // Predicated region
    $region6: #{tpu_custom_call.1} parent=1 // pred_check
      _
    $region7: #{tpu_custom_call.1} parent=1 // pred_check_branch
      %22 = sbr.rel (0) target = $region9
    $region8: #{tpu_custom_call.1} parent=1 // pred_region
      _
    $region9: #{tpu_custom_call.1} parent=1 // pred_fallthru
      _
    // Predicated region
    $region10: #{tpu_custom_call.1} parent=1 // pred_check
      _
    $region11: #{tpu_custom_call.1} parent=1 // pred_check_branch
      %24 = sbr.rel (0) target = $region13
    $region12: #{tpu_custom_call.1} parent=1 // pred_region
      _
    $region13: #{tpu_custom_call.1} parent=1 // pred_fallthru
      _
    // Predicated region
    $region14: #{tpu_custom_call.1} parent=1 // pred_check
      _
    $region15: #{tpu_custom_call.1} parent=1 // pred_check_branch
      %26 = sbr.rel (0) target = $region17
    $region16: #{tpu_custom_call.1} parent=1 // pred_region
      %27 = dma.done [#allocation4], 128
    $region17: #{tpu_custom_call.1} parent=1 // pred_fallthru
      _
    %v28 = vld [vmem:[#allocation3] sm:$0xff]
    %v29 = vld [vmem:[%s1] sm:$0x1]
    %v31 = vlaneseq
    %v32 = vshrl.u32 %v31, 7
    %v33 = vsub.s32 0, %v32
    %v34 = vrot.slane %v29, %v33
    %v36 = vmul.f32 %v28, %v34
    %vm37 = vcmask 523264
    %v38 = vsel %vm37, %v36, 0.0
    %39 = vadd.xlane.f32.xlu0 %v38
    %v40 = vpop.xlane.xlu0 %39
    %s41 = sld [smem:[#allocation2]]
    %v42 = vstv %s41
    %v43 = vadd.f32 %v40, %v42
    %v44 = vmul.f32 %v43, 0.2
    %v45 = vmax.f32 %v43, %v44
    %v46 = vsub.f32 0.0, %v45
    %v47 = vmul.f32 %v46, 1.442695
    %v48 = vpow.pop %v47
    %v49 = vadd.f32 %v48, 1.0
    %v50 = vrcp.pop %v49
    %v51 = vmul.f32 1.0, %v50
    %v53 = vlaneseq
    %v54 = vand.u32 %v53, 127
    %v55 = vlaneseq
    %v56 = vshrl.u32 %v55, 7
    %v57 = vsub.s32 %v54, %v56
    %v58 = vrot.slane %v51, %v57
    %vm60 = vcmask 57344
    %61 = vst.msk [vmem:[#allocation6] sm:$0x1] %vm60, %v58
    // Predicated region
    $region18: #{tpu_custom_call.1} parent=1 // pred_check
      _
    $region19: #{tpu_custom_call.1} parent=1 // pred_check_branch
      %63 = sbr.rel (0) target = $region21
    $region20: #{tpu_custom_call.1} parent=1 // pred_region
      %s65 = ssub.s32 16, 16
      %66 = vsyncadd [#allocation5], %s65
      %s68 = sshll.u32 [#allocation6], 4
      %s69 = int_to_ptr.vmem [resolvable:$true] %s68
      %71 = dma.vmem_to_hbm [thread:$0]  %s69, 16, %s3, [#allocation5]
    $region21: #{tpu_custom_call.1} parent=1 // pred_fallthru
      _
    // Predicated region
    $region22: #{tpu_custom_call.1} parent=1 // pred_check
      _
    $region23: #{tpu_custom_call.1} parent=1 // pred_check_branch
      %73 = sbr.rel (0) target = $region25
    $region24: #{tpu_custom_call.1} parent=1 // pred_region
      %74 = dma.done [#allocation5], 16
    $region25: #{tpu_custom_call.1} parent=1 // pred_fallthru
      _
    %75 = vsyncpa [#allocation4], 1
    %76 = vsyncpa [#allocation5], 1

</llo_original>
